<compile_context>
chip_gen: v6e
topology: v6e:2x2x1
jax: 0.10.0
libtpu: 0.0.40
codegen_flags: <defaults>
</compile_context>

<pallas_src>
import functools

import jax
import jax.numpy as jnp
import numpy as np
from jax.experimental import pallas as pl
from jax.experimental.pallas import tpu as pltpu


def _round_up(x, m):
    return (x + m - 1) // m * m


def item_loading_kernel(x2_ref, w_hot_ref, w_oh_ref, out_ref, *, n_rate):
    tb = x2_ref.shape[0]
    oh_w = w_oh_ref.shape[0]            # padded one-hot width (multiple of 128)
    two_d = out_ref.shape[1] // 2       # sigmoid applies to lanes >= 2*D

    # One load of the raw integer block; reused for indices and multi-hot.
    x2i = x2_ref[...]                                     # (TB, n_feat) int
    rate_idx = x2i[:, 0:1].astype(jnp.int32)              # (TB, 1)
    year_idx = x2i[:, 1:2].astype(jnp.int32)              # (TB, 1)

    # Fused one-hot for both table lookups from a single hoisted iota:
    #   lane == rate_idx            -> rate table row
    #   lane == year_idx + n_rate   -> year table row
    # (padding lanes >= n_rate+n_year never match -> stay zero)
    col = jax.lax.broadcasted_iota(jnp.int32, (tb, oh_w), 1)
    oh = ((col == rate_idx) | (col == (year_idx + n_rate))).astype(jnp.float32)

    # Multi-hot LHS is just x2 cast to float; the index lanes (0, 1) multiply
    # zero rows of W_hot so they contribute nothing.
    hot = x2i.astype(jnp.float32)                          # (TB, n_feat)

    # Two MXU pushes sharing the accumulator (no concat copy in VMEM).
    acc = jnp.dot(hot, w_hot_ref[...], preferred_element_type=jnp.float32)
    acc = acc + jnp.dot(oh, w_oh_ref[...], preferred_element_type=jnp.float32)

    # One masked sigmoid over the genre/director lanes, one lane-dense store.
    out_col = jax.lax.broadcasted_iota(jnp.int32, acc.shape, 1)
    out_ref[...] = jnp.where(out_col >= two_d, jax.nn.sigmoid(acc),
                             acc).astype(out_ref.dtype)


def build_fused_weights(rate_tab, year_tab, w_genre_t, w_director_t):
    """Two resident weight blocks:
       W_hot (n_feat, 4D): rows 0..1 zero (index lanes), rows 2..26 genre,
                           rows 27..  director.
       W_oh  (oh_w, 4D):   rows 0..n_rate-1 rate table, then year table."""
    n_rate, D = rate_tab.shape
    n_year = year_tab.shape[0]
    n_genre = w_genre_t.shape[0]            # 25, fixed by x2[:, 2:27]
    n_director = w_director_t.shape[0]
    n_feat = 2 + n_genre + n_director
    oh_w = _round_up(n_rate + n_year, 128)

    w_hot = jnp.zeros((n_feat, 4 * D), jnp.float32)
    w_hot = w_hot.at[2:2 + n_genre, 2 * D:3 * D].set(w_genre_t.astype(jnp.float32))
    w_hot = w_hot.at[2 + n_genre:n_feat, 3 * D:4 * D].set(
        w_director_t.astype(jnp.float32))

    w_oh = jnp.zeros((oh_w, 4 * D), jnp.float32)
    w_oh = w_oh.at[0:n_rate, 0:D].set(rate_tab.astype(jnp.float32))
    w_oh = w_oh.at[n_rate:n_rate + n_year, D:2 * D].set(
        year_tab.astype(jnp.float32))
    return w_hot, w_oh


def item_loading(x2, rate_tab, year_tab, w_genre_t, w_director_t, *,
                 tb=512, out_dtype=jnp.float32):
    """x2: (B, 2 + n_genre + n_director) integer array (int32 or int8).
    Returns (B, 4*D) `out_dtype`.  For large B pick `tb` so the grid has
    >= 2 steps (>= 4 on v7x) to keep both TensorCores busy."""
    n_rate, D = rate_tab.shape
    n_genre = w_genre_t.shape[0]
    n_director = w_director_t.shape[0]
    n_feat = 2 + n_genre + n_director
    B = x2.shape[0]
    assert x2.shape[1] == n_feat, (x2.shape, n_feat)

    w_hot, w_oh = build_fused_weights(rate_tab, year_tab, w_genre_t, w_director_t)
    oh_w = w_oh.shape[0]

    # x2 is consumed as-is.  Only pad the batch (cheap integer pad of < 8 rows)
    # when B is not a multiple of 8 so every block's sublane dim stays legal.
    if B % 8 != 0:
        x2 = jnp.pad(x2, ((0, 8 - B % 8), (0, 0)))
    Bp = x2.shape[0]

    tb_eff = max(8, min(_round_up(tb, 8), Bp))
    grid = (pl.cdiv(Bp, tb_eff),)

    kernel = functools.partial(item_loading_kernel, n_rate=n_rate)

    out = pl.pallas_call(
        kernel,
        out_shape=jax.ShapeDtypeStruct((Bp, 4 * D), out_dtype),
        grid_spec=pltpu.PrefetchScalarGridSpec(
            num_scalar_prefetch=0,
            grid=grid,
            in_specs=[
                # raw x2 block: full-extent last dim (n_feat), batch-tiled rows
                pl.BlockSpec((tb_eff, n_feat), lambda i: (i, 0)),
                # resident weights (constant index_map)
                pl.BlockSpec((n_feat, 4 * D), lambda i: (0, 0)),
                pl.BlockSpec((oh_w, 4 * D), lambda i: (0, 0)),
            ],
            out_specs=pl.BlockSpec((tb_eff, 4 * D), lambda i: (i, 0)),
        ),
        compiler_params=pltpu.CompilerParams(
            dimension_semantics=("parallel",)),
    )(x2, w_hot, w_oh)
    return out if Bp == B else out[:B]


def item_loading_ref(x2, rate_tab, year_tab, w_genre_t, w_director_t):
    n_director = w_director_t.shape[0]
    rate_emb = jnp.take(rate_tab, x2[:, 0], axis=0)
    year_emb = jnp.take(year_tab, x2[:, 1], axis=0)
    genre_emb = jax.nn.sigmoid(x2[:, 2:27].astype(jnp.float32) @ w_genre_t)
    director_emb = jax.nn.sigmoid(
        x2[:, 27:27 + n_director].astype(jnp.float32) @ w_director_t)
    return jnp.concatenate([rate_emb, year_emb, genre_emb, director_emb], axis=1)


def _make_inputs(key, B, D, n_rate, n_year, n_genre, n_director):
    k1, k2, k3, k4, k5, k6, k7, k8 = jax.random.split(key, 8)
    rate_tab = jax.random.normal(k1, (n_rate, D), jnp.float32)
    year_tab = jax.random.normal(k2, (n_year, D), jnp.float32)
    # torch Linear weight is (out, in); pass transposed (in, out) to the kernel.
    w_genre_t = 0.1 * jax.random.normal(k3, (n_genre, D), jnp.float32)
    w_director_t = 0.1 * jax.random.normal(k4, (n_director, D), jnp.float32)

    rate_idx = jax.random.randint(k5, (B, 1), 0, n_rate, jnp.int32)
    year_idx = jax.random.randint(k6, (B, 1), 0, n_year, jnp.int32)
    genre_hot = jax.random.bernoulli(k7, 0.3, (B, n_genre)).astype(jnp.int32)
    director_hot = jax.random.bernoulli(k8, 0.05, (B, n_director)).astype(jnp.int32)
    x2 = jnp.concatenate([rate_idx, year_idx, genre_hot, director_hot], axis=1)
    return x2, rate_tab, year_tab, w_genre_t, w_director_t


if __name__ == "__main__":
    # MAMO MovieLens-style config: genre dim is fixed to 25 by the hard-coded
    # slice x2[:, 2:27] in the original module.
    D = 32           # embedding_dim
    n_rate = 6
    n_year = 81
    n_genre = 25
    n_director = 64

    key = jax.random.PRNGKey(0)
    k_small, k_big = jax.random.split(key)

    # Small batch (single grid step, batch already a multiple of 8).
    B = 8
    x2, rate_tab, year_tab, w_genre_t, w_director_t = _make_inputs(
        k_small, B, D, n_rate, n_year, n_genre, n_director)
    out = jax.block_until_ready(
        item_loading(x2, rate_tab, year_tab, w_genre_t, w_director_t))
    ref = item_loading_ref(x2, rate_tab, year_tab, w_genre_t, w_director_t)
    assert out.shape == (B, 4 * D)
    np.testing.assert_allclose(np.asarray(out), np.asarray(ref), rtol=1e-5, atol=1e-5)

    # Larger, non-multiple-of-8 batch with a small tile: exercises the
    # multi-step "parallel" grid, the ragged boundary block and the batch pad.
    B2 = 300
    x2b, rtb, ytb, wgb, wdb = _make_inputs(
        k_big, B2, D, n_rate, n_year, n_genre, n_director)
    out2 = jax.block_until_ready(item_loading(x2b, rtb, ytb, wgb, wdb, tb=128))
    ref2 = item_loading_ref(x2b, rtb, ytb, wgb, wdb)
    assert out2.shape == (B2, 4 * D)
    np.testing.assert_allclose(np.asarray(out2), np.asarray(ref2), rtol=1e-5, atol=1e-5)

    print("KERNEL_OK")
</pallas_src>

<mosaic_0001>
module attributes {stable_mosaic.version = 11 : i64} {
  func.func @item_loading_kernel(%arg0: i32, %arg1: memref<8x91xi32, #tpu.memory_space<vmem>>, %arg2: memref<91x128xf32, #tpu.memory_space<vmem>>, %arg3: memref<128x128xf32, #tpu.memory_space<vmem>>, %arg4: memref<8x128xf32, #tpu.memory_space<vmem>>) attributes {dimension_semantics = [#tpu.dimension_semantics<parallel>], iteration_bounds = array<i64: 1>, scalar_prefetch = 0 : i64, scratch_operands = 0 : i64, tpu.core_type = #tpu.core_type<tc>, window_params = [{transform_indices = @transform_0, window_bounds = array<i64: 8, 91>}, {pipeline_mode = #tpu.pipeline_mode<synchronous>, transform_indices = @transform_1, window_bounds = array<i64: 91, 128>}, {pipeline_mode = #tpu.pipeline_mode<synchronous>, transform_indices = @transform_2, window_bounds = array<i64: 128, 128>}, {transform_indices = @transform_3, window_bounds = array<i64: 8, 128>}]} {
    %c0 = arith.constant 0 : index
    %c0_0 = arith.constant 0 : index
    %0 = vector.load %arg1[%c0, %c0_0] : memref<8x91xi32, #tpu.memory_space<vmem>>, vector<8x91xi32>
    %1 = vector.extract_strided_slice %0 {offsets = [0, 0], sizes = [8, 1], strides = [1, 1]} : vector<8x91xi32> to vector<8x1xi32>
    %2 = vector.extract_strided_slice %0 {offsets = [0, 1], sizes = [8, 1], strides = [1, 1]} : vector<8x91xi32> to vector<8x1xi32>
    %3 = tpu.iota {dimensions = array<i32: 1>} : vector<8x128xi32>
    %4 = vector.broadcast %1 : vector<8x1xi32> to vector<8x128xi32>
    %5 = arith.cmpi eq, %3, %4 : vector<8x128xi32>
    %c6_i32 = arith.constant 6 : i32
    %6 = vector.broadcast %c6_i32 : i32 to vector<8x1xi32>
    %7 = arith.addi %2, %6 : vector<8x1xi32>
    %8 = vector.broadcast %7 : vector<8x1xi32> to vector<8x128xi32>
    %9 = arith.cmpi eq, %3, %8 : vector<8x128xi32>
    %10 = arith.ori %5, %9 : vector<8x128xi1>
    %11 = arith.extui %10 : vector<8x128xi1> to vector<8x128xi32>
    %12 = arith.sitofp %11 : vector<8x128xi32> to vector<8x128xf32>
    %13 = arith.sitofp %0 : vector<8x91xi32> to vector<8x91xf32>
    %c0_1 = arith.constant 0 : index
    %c0_2 = arith.constant 0 : index
    %14 = vector.load %arg2[%c0_1, %c0_2] : memref<91x128xf32, #tpu.memory_space<vmem>>, vector<91x128xf32>
    %cst = arith.constant dense<0.000000e+00> : vector<8x128xf32>
    %15 = tpu.matmul %13, %14, %cst {dimension_numbers = #tpu.dot_dimension_numbers<[1], [0], [0], [1], [0, 0, 1, 1], [], []>} : vector<8x91xf32>, vector<91x128xf32>, vector<8x128xf32> -> vector<8x128xf32>
    %c0_3 = arith.constant 0 : index
    %c0_4 = arith.constant 0 : index
    %16 = vector.load %arg3[%c0_3, %c0_4] : memref<128x128xf32, #tpu.memory_space<vmem>>, vector<128x128xf32>
    %cst_5 = arith.constant dense<0.000000e+00> : vector<8x128xf32>
    %17 = tpu.matmul %12, %16, %cst_5 {dimension_numbers = #tpu.dot_dimension_numbers<[1], [0], [0], [1], [0, 0, 1, 1], [], []>} : vector<8x128xf32>, vector<128x128xf32>, vector<8x128xf32> -> vector<8x128xf32>
    %18 = arith.addf %15, %17 : vector<8x128xf32>
    %19 = tpu.iota {dimensions = array<i32: 1>} : vector<8x128xi32>
    %c64_i32 = arith.constant 64 : i32
    %20 = vector.broadcast %c64_i32 : i32 to vector<8x128xi32>
    %21 = arith.cmpi sge, %19, %20 : vector<8x128xi32>
    %22 = arith.negf %18 : vector<8x128xf32>
    %23 = math.exp %22 : vector<8x128xf32>
    %cst_6 = arith.constant 1.000000e+00 : f32
    %24 = vector.broadcast %cst_6 : f32 to vector<8x128xf32>
    %25 = arith.addf %24, %23 : vector<8x128xf32>
    %26 = arith.divf %24, %25 : vector<8x128xf32>
    %27 = arith.select %21, %26, %18 : vector<8x128xi1>, vector<8x128xf32>
    %c0_7 = arith.constant 0 : index
    %c0_8 = arith.constant 0 : index
    %28 = vector.load %arg4[%c0_7, %c0_8] : memref<8x128xf32, #tpu.memory_space<vmem>>, vector<8x128xf32>
    tpu.vector_store %arg4[%c0_7, %c0_8], %27 {strides = array<i32>} : memref<8x128xf32, #tpu.memory_space<vmem>>, vector<8x128xf32>,
    return
  }
  func.func @transform_0(%arg0: i32) -> (i32, i32) {
    %c0_i32 = arith.constant 0 : i32
    %c0_i32_0 = arith.constant 0 : i32
    return %arg0, %c0_i32 : i32, i32
  }
  func.func @transform_1(%arg0: i32) -> (i32, i32) {
    %c0_i32 = arith.constant 0 : i32
    %c0_i32_0 = arith.constant 0 : i32
    %c0_i32_1 = arith.constant 0 : i32
    return %c0_i32, %c0_i32_0 : i32, i32
  }
  func.func @transform_2(%arg0: i32) -> (i32, i32) {
    %c0_i32 = arith.constant 0 : i32
    %c0_i32_0 = arith.constant 0 : i32
    %c0_i32_1 = arith.constant 0 : i32
    return %c0_i32, %c0_i32_0 : i32, i32
  }
  func.func @transform_3(%arg0: i32) -> (i32, i32) {
    %c0_i32 = arith.constant 0 : i32
    %c0_i32_0 = arith.constant 0 : i32
    return %arg0, %c0_i32 : i32, i32
  }
}

</mosaic_0001>

<llo_original>
// kernel: tpu_custom_call.1
$region0: #{tpu_custom_call.1}
  #allocation0 [shape = 'u32[]', space=smem, size = 0x4, offset = 0x4, fixed_abs, tag = 'smem constant byte address 0x4 - core index']
  #allocation1 [shape = 'u32[144,128]{1,0:T(1,128)}', space=vmem, size = 0x12000, scoped, tag = 'internal scratch']
  %s0 = inlined_call_operand.hbm [shape: s32[8,91], index: 0, kind: input, shape index: {}]
  %s1 = inlined_call_operand.hbm [shape: f32[91,128], index: 1, kind: input, shape index: {}]
  %s2 = inlined_call_operand.hbm [shape: f32[128,128], index: 2, kind: input, shape index: {}]
  %s3 = inlined_call_operand.hbm [shape: f32[8,128], index: 3, kind: output, shape index: {}]
  %s4 = sld [smem:[#allocation0]]
  $region34: #{tpu_custom_call.1} parent=0
    _
  %s6 = ssub.s32 1, %s4
  %s7 = scalar_select 0, %s6, %s4
  $region1: #{tpu_custom_call.1} parent=0
    #allocation2 [shape = 'u8[4096]{0}', space=vmem, size = 0x1000, scoped, tag = 'input window, operand 0, single buffered']
    #allocation3 [shape = 's32[1]{0}', space=sflag, size = 0x4, scoped, tag = 'scoped memory for tpu_custom_call.1']
    #allocation4 [shape = 's32[1]{0}', space=sflag, size = 0x4, scoped, tag = 'scoped memory for tpu_custom_call.1']
    #allocation5 [shape = 'u8[49152]{0}', space=vmem, size = 0xc000, scoped, tag = 'input window, operand 1, single buffered']
    #allocation6 [shape = 's32[1]{0}', space=sflag, size = 0x4, scoped, tag = 'scoped memory for tpu_custom_call.1']
    #allocation7 [shape = 'u8[65536]{0}', space=vmem, size = 0x10000, scoped, tag = 'input window, operand 2, single buffered']
    #allocation8 [shape = 'u8[4096]{0}', space=vmem, size = 0x1000, scoped, tag = 'output window, operand 0, single buffered']
    %8 = vsyncpa [#allocation3], 0
    %9 = vsyncpa [#allocation6], 0
    %10 = vsyncpa [#allocation4], 0
    // Predicated region
    $region2: #{tpu_custom_call.1} parent=1 // pred_check
      _
    $region3: #{tpu_custom_call.1} parent=1 // pred_check_branch
      %12 = sbr.rel (0) target = $region5
    $region4: #{tpu_custom_call.1} parent=1 // pred_region
      %s14 = ssub.s32 128, 128
      %15 = vsyncadd [#allocation3], %s14
      %s17 = sshll.u32 [#allocation2], 4
      %s18 = int_to_ptr.vmem [resolvable:$true] %s17
      %20 = dma.hbm_to_vmem [thread:$0]  %s0, 128, %s18, [#allocation3]
    $region5: #{tpu_custom_call.1} parent=1 // pred_fallthru
      _
    // Predicated region
    $region6: #{tpu_custom_call.1} parent=1 // pred_check
      _
    $region7: #{tpu_custom_call.1} parent=1 // pred_check_branch
      %22 = sbr.rel (0) target = $region9
    $region8: #{tpu_custom_call.1} parent=1 // pred_region
      %s24 = ssub.s32 1536, 1536
      %25 = vsyncadd [#allocation6], %s24
      %s26 = sshll.u32 [#allocation5], 4
      %s27 = int_to_ptr.vmem [resolvable:$true] %s26
      %32 = dma.hbm_to_vmem [thread:$0]  %s1, 1536, %s27, [#allocation6], 128, 128, 8
    $region9: #{tpu_custom_call.1} parent=1 // pred_fallthru
      _
    // Predicated region
    $region10: #{tpu_custom_call.1} parent=1 // pred_check
      _
    $region11: #{tpu_custom_call.1} parent=1 // pred_check_branch
      %34 = sbr.rel (0) target = $region13
    $region12: #{tpu_custom_call.1} parent=1 // pred_region
      %s36 = ssub.s32 2048, 2048
      %37 = vsyncadd [#allocation6], %s36
      %s38 = sshll.u32 [#allocation7], 4
      %s39 = int_to_ptr.vmem [resolvable:$true] %s38
      %44 = dma.hbm_to_vmem [thread:$0]  %s2, 2048, %s39, [#allocation6], 128, 128, 8
    $region13: #{tpu_custom_call.1} parent=1 // pred_fallthru
      _
    // Predicated region
    $region14: #{tpu_custom_call.1} parent=1 // pred_check
      _
    $region15: #{tpu_custom_call.1} parent=1 // pred_check_branch
      %46 = sbr.rel (0) target = $region17
    $region16: #{tpu_custom_call.1} parent=1 // pred_region
      %47 = dma.done [#allocation3], 128
    $region17: #{tpu_custom_call.1} parent=1 // pred_fallthru
      _
    // Predicated region
    $region18: #{tpu_custom_call.1} parent=1 // pred_check
      _
    $region19: #{tpu_custom_call.1} parent=1 // pred_check_branch
      %49 = sbr.rel (0) target = $region21
    $region20: #{tpu_custom_call.1} parent=1 // pred_region
      %50 = dma.done [#allocation6], 1536
    $region21: #{tpu_custom_call.1} parent=1 // pred_fallthru
      _
    // Predicated region
    $region22: #{tpu_custom_call.1} parent=1 // pred_check
      _
    $region23: #{tpu_custom_call.1} parent=1 // pred_check_branch
      %52 = sbr.rel (0) target = $region25
    $region24: #{tpu_custom_call.1} parent=1 // pred_region
      %53 = dma.done [#allocation6], 2048
    $region25: #{tpu_custom_call.1} parent=1 // pred_fallthru
      _
    %v54 = vld [vmem:[#allocation2] sm:$0xff]
    %v55 = vlaneseq
    %v56 = vand.u32 %v55, 127
    %57 = vset.pattern.permute.xlu0 0
    %58 = vperm.xlu0 %57, %v54
    %v59 = vpop.permute.xlu0 %58
    %vm60 = vcmp.eq.s32.totalorder %v56, %v59
    %v61 = vadd.s32 %v54, 6
    %62 = vset.pattern.permute.xlu0 1
    %63 = vperm.xlu0 %62, %v61
    %v64 = vpop.permute.xlu0 %63
    %vm65 = vcmp.eq.s32.totalorder %v56, %v64
    %vm66 = vmor %vm60, %vm65
    %v67 = vsel %vm66, 1, 0
    %v68 = vcvt.s32.f32 %v67
    %v69 = vcvt.s32.f32 %v54
    %v70 = vld [vmem:[#allocation5] sm:$0xff]
    %v71 = vld [vmem:[#allocation5 + $0x8] sm:$0xff]
    %v72 = vld [vmem:[#allocation5 + $0x10] sm:$0xff]
    %v73 = vld [vmem:[#allocation5 + $0x18] sm:$0xff]
    %v74 = vld [vmem:[#allocation5 + $0x20] sm:$0xff]
    %v75 = vld [vmem:[#allocation5 + $0x28] sm:$0xff]
    %v76 = vld [vmem:[#allocation5 + $0x30] sm:$0xff]
    %v77 = vld [vmem:[#allocation5 + $0x38] sm:$0xff]
    %v78 = vld [vmem:[#allocation5 + $0x40] sm:$0xff]
    %v79 = vld [vmem:[#allocation5 + $0x48] sm:$0xff]
    %v80 = vld [vmem:[#allocation5 + $0x50] sm:$0xff]
    %v81 = vld [vmem:[#allocation5 + $0x58] sm:$0x7]
    %v82 = vld [vmem:[#allocation7] sm:$0xff]
    %v83 = vld [vmem:[#allocation7 + $0x8] sm:$0xff]
    %v84 = vld [vmem:[#allocation7 + $0x10] sm:$0xff]
    %v85 = vld [vmem:[#allocation7 + $0x18] sm:$0xff]
    %v86 = vld [vmem:[#allocation7 + $0x20] sm:$0xff]
    %v87 = vld [vmem:[#allocation7 + $0x28] sm:$0xff]
    %v88 = vld [vmem:[#allocation7 + $0x30] sm:$0xff]
    %v89 = vld [vmem:[#allocation7 + $0x38] sm:$0xff]
    %v90 = vld [vmem:[#allocation7 + $0x40] sm:$0xff]
    %v91 = vld [vmem:[#allocation7 + $0x48] sm:$0xff]
    %v92 = vld [vmem:[#allocation7 + $0x50] sm:$0xff]
    %v93 = vld [vmem:[#allocation7 + $0x58] sm:$0xff]
    %v94 = vld [vmem:[#allocation7 + $0x60] sm:$0xff]
    %v95 = vld [vmem:[#allocation7 + $0x68] sm:$0xff]
    %v96 = vld [vmem:[#allocation7 + $0x70] sm:$0xff]
    %v97 = vld [vmem:[#allocation7 + $0x78] sm:$0xff]
    %98 = vmatprep.subr.mxu0 0.0
    %99 = vmatpush1.msra.mxu0 %v97
    %100 = vmatprep.subr.mxu0 0.0
    %101 = vmatpush1.msra.mxu0 %v96
    %102 = vmatprep.subr.mxu0 0.0
    %103 = vmatpush1.msra.mxu0 %v95
    %104 = vmatprep.subr.mxu0 0.0
    %105 = vmatpush1.msra.mxu0 %v94
    %106 = vmatprep.subr.mxu0 0.0
    %107 = vmatpush1.msra.mxu0 %v93
    %108 = vmatprep.subr.mxu0 0.0
    %109 = vmatpush1.msra.mxu0 %v92
    %110 = vmatprep.subr.mxu0 0.0
    %111 = vmatpush1.msra.mxu0 %v91
    %112 = vmatprep.subr.mxu0 0.0
    %113 = vmatpush1.msra.mxu0 %v90
    %114 = vmatprep.subr.mxu0 0.0
    %115 = vmatpush1.msra.mxu0 %v89
    %116 = vmatprep.subr.mxu0 0.0
    %117 = vmatpush1.msra.mxu0 %v88
    %118 = vmatprep.subr.mxu0 0.0
    %119 = vmatpush1.msra.mxu0 %v87
    %120 = vmatprep.subr.mxu0 0.0
    %121 = vmatpush1.msra.mxu0 %v86
    %122 = vmatprep.subr.mxu0 0.0
    %123 = vmatpush1.msra.mxu0 %v85
    %124 = vmatprep.subr.mxu0 0.0
    %125 = vmatpush1.msra.mxu0 %v84
    %126 = vmatprep.subr.mxu0 0.0
    %127 = vmatpush1.msra.mxu0 %v83
    %128 = vmatprep.subr.mxu0 0.0
    %129 = vmatpush1.msra.mxu0 %v82
    %130 = vmatprep.subr.mxu0 0.0
    %131 = vmatpush2.msra.mxu0 0.0
    %132 = vmatprep.subr.mxu0 0.0
    %133 = vmatpush2.msra.mxu0 0.0
    %134 = vmatprep.subr.mxu0 0.0
    %135 = vmatpush2.msra.mxu0 0.0
    %136 = vmatprep.subr.mxu0 0.0
    %137 = vmatpush2.msra.mxu0 0.0
    %138 = vmatprep.subr.mxu0 0.0
    %139 = vmatpush2.msra.mxu0 0.0
    %140 = vmatprep.subr.mxu0 0.0
    %141 = vmatpush2.msra.mxu0 0.0
    %142 = vmatprep.subr.mxu0 0.0
    %143 = vmatpush2.msra.mxu0 0.0
    %144 = vmatprep.subr.mxu0 0.0
    %145 = vmatpush2.msra.mxu0 0.0
    %146 = vmatprep.subr.mxu0 0.0
    %147 = vmatpush2.msra.mxu0 0.0
    %148 = vmatprep.subr.mxu0 0.0
    %149 = vmatpush2.msra.mxu0 0.0
    %150 = vmatprep.subr.mxu0 0.0
    %151 = vmatpush2.msra.mxu0 0.0
    %152 = vmatprep.subr.mxu0 0.0
    %153 = vmatpush2.msra.mxu0 0.0
    %154 = vmatprep.subr.mxu0 0.0
    %155 = vmatpush2.msra.mxu0 0.0
    %156 = vmatprep.subr.mxu0 0.0
    %157 = vmatpush2.msra.mxu0 0.0
    %158 = vmatprep.subr.mxu0 0.0
    %159 = vmatpush2.msra.mxu0 0.0
    %160 = vmatprep.subr.mxu0 0.0
    %161 = vmatpush2.msra.mxu0 0.0
    %162 = vmatprep.mubr.f32.mxu0 0.0
    %163 = vmatmul.mubr.f32.gmra.mxu0 %v68
    %v164 = vpop.f32.mrf.mxu0
    %v165 = vadd.f32 0.0, %v164
    %v166 = vpop.f32.mrf.mxu0
    %167 = vdwg.mxu0
    %vm168 = vcmask 744448
    %v170 = vsel %vm168, %v69, 0
    %vm172 = vcmask 1042432
    %v174 = vsel %vm172, %v81, 0
    %176 = vmatprep.subr.mxu0 0.0
    %177 = vmatpush1.msra.mxu0 0.0
    %178 = vmatprep.subr.mxu0 0.0
    %179 = vmatpush1.msra.mxu0 0.0
    %180 = vmatprep.subr.mxu0 0.0
    %181 = vmatpush1.msra.mxu0 0.0
    %182 = vmatprep.subr.mxu0 0.0
    %183 = vmatpush1.msra.mxu0 0.0
    %184 = vmatprep.subr.mxu0 0.0
    %185 = vmatpush1.msra.mxu0 %v174
    %186 = vmatprep.subr.mxu0 0.0
    %187 = vmatpush1.msra.mxu0 %v80
    %188 = vmatprep.subr.mxu0 0.0
    %189 = vmatpush1.msra.mxu0 %v79
    %190 = vmatprep.subr.mxu0 0.0
    %191 = vmatpush1.msra.mxu0 %v78
    %192 = vmatprep.subr.mxu0 0.0
    %193 = vmatpush1.msra.mxu0 %v77
    %194 = vmatprep.subr.mxu0 0.0
    %195 = vmatpush1.msra.mxu0 %v76
    %196 = vmatprep.subr.mxu0 0.0
    %197 = vmatpush1.msra.mxu0 %v75
    %198 = vmatprep.subr.mxu0 0.0
    %199 = vmatpush1.msra.mxu0 %v74
    %200 = vmatprep.subr.mxu0 0.0
    %201 = vmatpush1.msra.mxu0 %v73
    %202 = vmatprep.subr.mxu0 0.0
    %203 = vmatpush1.msra.mxu0 %v72
    %204 = vmatprep.subr.mxu0 0.0
    %205 = vmatpush1.msra.mxu0 %v71
    %206 = vmatprep.subr.mxu0 0.0
    %207 = vmatpush1.msra.mxu0 %v70
    %208 = vmatprep.subr.mxu0 0.0
    %209 = vmatpush2.msra.mxu0 0.0
    %210 = vmatprep.subr.mxu0 0.0
    %211 = vmatpush2.msra.mxu0 0.0
    %212 = vmatprep.subr.mxu0 0.0
    %213 = vmatpush2.msra.mxu0 0.0
    %214 = vmatprep.subr.mxu0 0.0
    %215 = vmatpush2.msra.mxu0 0.0
    %216 = vmatprep.subr.mxu0 0.0
    %217 = vmatpush2.msra.mxu0 0.0
    %218 = vmatprep.subr.mxu0 0.0
    %219 = vmatpush2.msra.mxu0 0.0
    %220 = vmatprep.subr.mxu0 0.0
    %221 = vmatpush2.msra.mxu0 0.0
    %222 = vmatprep.subr.mxu0 0.0
    %223 = vmatpush2.msra.mxu0 0.0
    %224 = vmatprep.subr.mxu0 0.0
    %225 = vmatpush2.msra.mxu0 0.0
    %226 = vmatprep.subr.mxu0 0.0
    %227 = vmatpush2.msra.mxu0 0.0
    %228 = vmatprep.subr.mxu0 0.0
    %229 = vmatpush2.msra.mxu0 0.0
    %230 = vmatprep.subr.mxu0 0.0
    %231 = vmatpush2.msra.mxu0 0.0
    %232 = vmatprep.subr.mxu0 0.0
    %233 = vmatpush2.msra.mxu0 0.0
    %234 = vmatprep.subr.mxu0 0.0
    %235 = vmatpush2.msra.mxu0 0.0
    %236 = vmatprep.subr.mxu0 0.0
    %237 = vmatpush2.msra.mxu0 0.0
    %238 = vmatprep.subr.mxu0 0.0
    %239 = vmatpush2.msra.mxu0 0.0
    %240 = vmatprep.mubr.f32.mxu0 0.0
    %241 = vmatmul.mubr.f32.gmra.mxu0 %v170
    %v242 = vpop.f32.mrf.mxu0
    %v243 = vadd.f32 %v165, %v242
    %v244 = vpop.f32.mrf.mxu0
    %245 = vdwg.mxu0
    %vm246 = vcmp.ge.s32.totalorder %v56, 64
    %v247 = vxor.u32 %v243, 2147483648
    %v248 = vmul.f32 %v247, 1.442695
    %v249 = vpow.pop %v248
    %v250 = vadd.f32 %v249, 1.0
    %v251 = vrcp.pop %v250
    %v252 = vmul.f32 1.0, %v251
    %v253 = vsel %vm246, %v252, %v243
    %254 = vst [vmem:[#allocation8] sm:$0xff] %v253
    // Predicated region
    $region26: #{tpu_custom_call.1} parent=1 // pred_check
      _
    $region27: #{tpu_custom_call.1} parent=1 // pred_check_branch
      %256 = sbr.rel (0) target = $region29
    $region28: #{tpu_custom_call.1} parent=1 // pred_region
      %s258 = ssub.s32 128, 128
      %259 = vsyncadd [#allocation4], %s258
      %s261 = sshll.u32 [#allocation8], 4
      %s262 = int_to_ptr.vmem [resolvable:$true] %s261
      %264 = dma.vmem_to_hbm [thread:$0]  %s262, 128, %s3, [#allocation4]
    $region29: #{tpu_custom_call.1} parent=1 // pred_fallthru
      _
    // Predicated region
    $region30: #{tpu_custom_call.1} parent=1 // pred_check
      _
    $region31: #{tpu_custom_call.1} parent=1 // pred_check_branch
      %266 = sbr.rel (0) target = $region33
    $region32: #{tpu_custom_call.1} parent=1 // pred_region
      %267 = dma.done [#allocation4], 128
    $region33: #{tpu_custom_call.1} parent=1 // pred_fallthru
      _
    %268 = vsyncpa [#allocation3], 1
    %269 = vsyncpa [#allocation6], 1
    %270 = vsyncpa [#allocation4], 1

</llo_original>
